<compile_context>
chip_gen: v5e
topology: v5e:2x2
jax: 0.10.0
libtpu: 0.0.40
codegen_flags: <defaults>
</compile_context>

<pallas_src>
import functools

import jax
import jax.numpy as jnp
from jax.experimental import pallas as pl
from jax.experimental.pallas import tpu as pltpu

NEG_SLOPE = 0.2          # PyG GATConv leaky_relu negative slope default
MASK_FILL = -1e30        # additive mask value for non-edges


def _round_up(x, m):
    return -(-x // m) * m


def _vmem_limit_bytes():
    """Generation-gated VMEM cap: ~3/4 of physical (96 MiB on v5e/v6e's
    128 MiB parts, 48 MiB on v7x's 64 MiB)."""
    cap = 64 * 1024 * 1024
    try:
        info = pltpu.get_tpu_info()
        cap = int(getattr(info, "vmem_capacity_bytes", cap) or cap)
    except Exception:
        pass
    return min((cap * 3) // 4, 100 * 1024 * 1024)


def _choose_attn_tiles(n, hc, heads, vmem_limit):
    """Pick (dst-row tile TM, src-chunk TK).  Both are power-of-two multiples
    of 128, sized so double-buffered inputs + scratch + in-flight f32
    temporaries stay under ~1/2 of the VMEM limit."""
    n_pad_est = _round_up(max(n, 1), 128)
    budget = vmem_limit // 2

    def usage(tm, tk):
        dbl = 2                                    # default double buffering
        inputs = dbl * (tk * hc * 2                # xp chunk (bf16)
                        + heads * tk * 4           # a_src^T chunk (f32)
                        + tm * heads * 4           # a_dst tile (f32)
                        + tm * tk                  # int8 adjacency block
                        + hc * 4)                  # bias
        outputs = dbl * tm * hc * 4
        scratch = tm * 128 * 4 + 2 * tm * max(hc, 128) * 4   # m + (l, acc)
        temps = tm * tk * (8 + 4 * heads)          # f32/bf16 per-head temporaries
        return inputs + outputs + scratch + temps

    tm, tk = 128, 128
    for cand_tm in (1024, 512, 256, 128):
        done = False
        for cand_tk in (512, 256, 128):
            if usage(cand_tm, cand_tk) <= budget:
                tm, tk = cand_tm, cand_tk
                done = True
                break
        if done:
            break
    while tm > 128 and tm > n_pad_est:
        tm //= 2
    while tk > 128 and tk > n_pad_est:
        tk //= 2
    # Keep >=2 destination-row tiles so both v7x TensorCores get work.
    while tm > 128 and n_pad_est // tm < 2:
        tm //= 2
    return tm, tk


def _proj_row_tile(n, vmem_limit):
    cap = 1024 if vmem_limit >= 80 * 1024 * 1024 else 512
    if n <= cap:
        return n
    for t in (1024, 512, 256, 128):
        if t <= cap and n % t == 0:
            return t
    return 128


def _proj_kernel(x_ref, w_ref, xp_ref, score_ref, *, hc, apply_input_elu):
    x = x_ref[...].astype(jnp.float32)
    if apply_input_elu:
        # F.elu on previous layer output; nn.Dropout is identity in eval mode.
        x = jnp.where(x > 0, x, jnp.exp(jnp.minimum(x, 0.0)) - 1.0)
    # One MXU matmul gives the projection plus folded per-head attention scores.
    xw = jnp.dot(x.astype(jnp.bfloat16), w_ref[...],
                 preferred_element_type=jnp.float32)       # (TMP, HC + 2H)
    xp_ref[...] = xw[:, :hc].astype(jnp.bfloat16)          # bf16: halves HBM/VMEM
    score_ref[...] = xw[:, hc:]                            # (TMP, 2H) f32, one store


def _attn_kernel(counts_ref, xp_ref, asrct_ref, adst_ref, adj_ref, bias_ref,
                 out_ref, m_ref, l_ref, acc_ref, *, heads, head_dim):
    i = pl.program_id(0)
    ks = pl.program_id(1)

    @pl.when(ks == 0)
    def _init():
        m_ref[...] = jnp.full_like(m_ref, MASK_FILL)
        l_ref[...] = jnp.zeros_like(l_ref)
        acc_ref[...] = jnp.zeros_like(acc_ref)

    @pl.when(counts_ref[i, ks] > 0)            # skip adjacency blocks with no edges
    def _update():
        # Additive mask built once per block from the int8 adjacency tile
        # (0 for edges, MASK_FILL for non-edges); reused by every head.
        adj_bias = (adj_ref[...].astype(jnp.float32) - 1.0) * (-MASK_FILL)
        a_dst = adst_ref[...]                               # (TM, H)  f32
        a_srct = asrct_ref[...]                             # (H, TK)  f32
        xp = xp_ref[...]                                    # (TK, HC) bf16
        # TODO(synk): for heads >> 8 switch to lax.fori_loop + pl.ds slices to
        # bound live ranges of the per-head (TM, TK) temporaries.
        for h in range(heads):
            lo = h * head_dim
            hi = lo + head_dim
            # logits[i, j] = a_dst[i] + a_src[j]  (PyG source_to_target flow)
            logits = a_dst[:, h:h + 1] + a_srct[h:h + 1, :]            # (TM, TK)
            e = jnp.where(logits > 0, logits, NEG_SLOPE * logits)      # LeakyReLU
            masked = e + adj_bias
            m_prev = m_ref[:, h:h + 1]
            m_new = jnp.maximum(
                jnp.maximum(m_prev, jnp.max(masked, axis=-1, keepdims=True)),
                0.5 * MASK_FILL)           # clamp: rows with no edges -> p == 0
            alpha = jnp.exp(m_prev - m_new)                             # (TM, 1)
            p = jnp.exp(masked - m_new)                                 # (TM, TK)
            # Online softmax: rescale running denominator / accumulator.
            l_ref[:, lo:hi] = alpha * l_ref[:, lo:hi] + jnp.sum(
                p, axis=-1, keepdims=True)
            acc_ref[:, lo:hi] = alpha * acc_ref[:, lo:hi] + jnp.dot(
                p.astype(jnp.bfloat16), xp[:, lo:hi],
                preferred_element_type=jnp.float32)
            m_ref[:, h:h + 1] = m_new
        # TODO(synk): attention-coefficient dropout (p=0.6) omitted (eval mode).

    @pl.when(ks == pl.num_programs(1) - 1)
    def _finalize():
        # Deferred normalization + bias: ONE lane-dense (TM, HC) store.
        inv = pl.reciprocal(jnp.maximum(l_ref[...], 1e-16), approx=True)
        out_ref[...] = (acc_ref[...] * inv + bias_ref[...]).astype(out_ref.dtype)


def gat_conv(x, adj_i8, counts, params, *, apply_input_elu, out_dtype,
             tm, tk, vmem_limit):
    n, fin = x.shape                         # n is already padded
    heads, head_dim = params["att_src"].shape
    hc = heads * head_dim

    # Fold att_src / att_dst into extra projection columns (wrapper glue).
    w = params["w"]
    w_r = w.reshape(fin, heads, head_dim)
    wa_src = jnp.einsum("fhc,hc->fh", w_r, params["att_src"])
    wa_dst = jnp.einsum("fhc,hc->fh", w_r, params["att_dst"])
    w_aug = jnp.concatenate([w, wa_src, wa_dst], axis=1).astype(jnp.bfloat16)

    tmp = _proj_row_tile(n, vmem_limit)
    xp, scores = pl.pallas_call(
        functools.partial(_proj_kernel, hc=hc, apply_input_elu=apply_input_elu),
        out_shape=(jax.ShapeDtypeStruct((n, hc), jnp.bfloat16),
                   jax.ShapeDtypeStruct((n, 2 * heads), jnp.float32)),
        grid=(n // tmp,),
        in_specs=[
            pl.BlockSpec((tmp, fin), lambda i: (i, 0)),                # x rows
            pl.BlockSpec((fin, hc + 2 * heads), lambda i: (0, 0)),     # W_aug
        ],
        out_specs=(
            pl.BlockSpec((tmp, hc), lambda i: (i, 0)),
            pl.BlockSpec((tmp, 2 * heads), lambda i: (i, 0)),
        ),
        compiler_params=pltpu.CompilerParams(
            dimension_semantics=("parallel",),
            vmem_limit_bytes=vmem_limit),
    )(x, w_aug)

    a_srct = scores[:, :heads].T             # tiny (H, n) glue transpose
    a_dst = scores[:, heads:]
    bias = params["bias"].reshape(1, hc)

    n_td, n_tk = n // tm, n // tk
    out = pl.pallas_call(
        functools.partial(_attn_kernel, heads=heads, head_dim=head_dim),
        out_shape=jax.ShapeDtypeStruct((n, hc), out_dtype),
        grid_spec=pltpu.PrefetchScalarGridSpec(
            num_scalar_prefetch=1,            # per-block edge counts -> SMEM
            grid=(n_td, n_tk),
            in_specs=[
                pl.BlockSpec((tk, hc), lambda i, k, c: (k, 0)),      # xp chunk (bf16)
                pl.BlockSpec((heads, tk), lambda i, k, c: (0, k)),   # a_src^T chunk
                pl.BlockSpec((tm, heads), lambda i, k, c: (i, 0)),   # a_dst tile
                pl.BlockSpec((tm, tk), lambda i, k, c: (i, k)),      # int8 adj block
                pl.BlockSpec((1, hc), lambda i, k, c: (0, 0)),       # bias
            ],
            out_specs=pl.BlockSpec((tm, hc), lambda i, k, c: (i, 0)),
            scratch_shapes=[
                pltpu.VMEM((tm, heads), jnp.float32),   # running max
                pltpu.VMEM((tm, hc), jnp.float32),      # running denom (per-head cols)
                pltpu.VMEM((tm, hc), jnp.float32),      # running weighted sum
            ]),
        compiler_params=pltpu.CompilerParams(
            dimension_semantics=("parallel", "arbitrary"),
            vmem_limit_bytes=vmem_limit),
    )(counts, xp, a_srct, a_dst, adj_i8, bias)
    return out


def gat_link_predictor_forward(x, edge_index, params):
    """Forward pass: conv1 -> ELU -> dropout(eval id) -> conv2 (no self-loops)."""
    n = x.shape[0]
    heads, head_dim = params["conv1"]["att_src"].shape
    hc = heads * head_dim

    vmem_limit = _vmem_limit_bytes()
    tm, tk = _choose_attn_tiles(n, hc, heads, vmem_limit)
    n_pad = _round_up(n, max(tm, tk))

    # Dense int8 adjacency mask (glue); adj[dst, src] = 1.  Padded rows/cols are
    # zero, so they are masked out and their outputs are sliced off.
    # TODO(synk): bit-pack adjacency (1 bit/edge) and cache it across forwards
    # to cut the dominant HBM stream further on v5e.
    adj = jnp.zeros((n_pad, n_pad), jnp.int8).at[edge_index[1], edge_index[0]].set(1)
    # Per-(dst-tile, src-chunk) edge counts for block skipping (scalar prefetch).
    counts = adj.astype(jnp.int32).reshape(
        n_pad // tm, tm, n_pad // tk, tk).sum(axis=(1, 3))
    x_pad = jnp.pad(x, ((0, n_pad - n), (0, 0)))

    h1 = gat_conv(x_pad, adj, counts, params["conv1"], apply_input_elu=False,
                  out_dtype=jnp.bfloat16, tm=tm, tk=tk, vmem_limit=vmem_limit)
    h2 = gat_conv(h1, adj, counts, params["conv2"], apply_input_elu=True,
                  out_dtype=jnp.float32, tm=tm, tk=tk, vmem_limit=vmem_limit)
    # TODO(synk): per-edge attention-weight extraction (return_attention=True)
    # would be a plain gather of alpha at edge positions; not needed here.
    return h2[:n]


def predict_link(node_embeddings, node_pairs):
    src = node_embeddings[node_pairs[0]]
    dst = node_embeddings[node_pairs[1]]
    return jax.nn.sigmoid(jnp.sum(src * dst, axis=1))


def _init_gat_params(key, fin, heads, head_dim):
    hc = heads * head_dim
    k1, k2, k3 = jax.random.split(key, 3)
    glorot_w = (6.0 / (fin + hc)) ** 0.5
    glorot_a = (6.0 / (1 + head_dim)) ** 0.5
    return {
        "w": jax.random.uniform(k1, (fin, hc), jnp.float32, -glorot_w, glorot_w),
        "att_src": jax.random.uniform(k2, (heads, head_dim), jnp.float32,
                                      -glorot_a, glorot_a),
        "att_dst": jax.random.uniform(k3, (heads, head_dim), jnp.float32,
                                      -glorot_a, glorot_a),
        "bias": jnp.zeros((hc,), jnp.float32),
    }


if __name__ == "__main__":
    N, Fin, hidden, heads = 32, 16, 32, 4
    head_dim = hidden // heads

    key = jax.random.PRNGKey(0)
    kx, ke1, ke2, kp1, kp2 = jax.random.split(key, 5)

    x = jax.random.normal(kx, (N, Fin), jnp.float32)

    # Deterministic graph: bidirectional ring (every node has >=1 incoming edge)
    # plus extra random edges.
    ring_src = jnp.arange(N, dtype=jnp.int32)
    ring_dst = jnp.roll(ring_src, -1)
    extra_src = jax.random.randint(ke1, (64,), 0, N, dtype=jnp.int32)
    extra_dst = jax.random.randint(ke2, (64,), 0, N, dtype=jnp.int32)
    edge_index = jnp.stack([
        jnp.concatenate([ring_src, ring_dst, extra_src]),
        jnp.concatenate([ring_dst, ring_src, extra_dst]),
    ])  # (2, E), row 0 = src, row 1 = dst

    params = {
        "conv1": _init_gat_params(kp1, Fin, heads, head_dim),
        "conv2": _init_gat_params(kp2, hidden, heads, head_dim),
    }

    node_embeddings = gat_link_predictor_forward(x, edge_index, params)
    node_embeddings = jax.block_until_ready(node_embeddings)
    assert node_embeddings.shape == (N, hidden)
    assert bool(jnp.all(jnp.isfinite(node_embeddings)))

    # Small link-prediction demo on top of the kernel outputs (plain JAX glue).
    node_pairs = jnp.array([[0, 3, 7], [1, 4, 9]], dtype=jnp.int32)
    probs = jax.block_until_ready(predict_link(node_embeddings, node_pairs))
    assert probs.shape == (3,)

    print("KERNEL_OK")
</pallas_src>

<mosaic_0001>
module attributes {stable_mosaic.version = 11 : i64} {
  func.func @_proj_kernel(%arg0: i32, %arg1: memref<128x16xf32, #tpu.memory_space<vmem>>, %arg2: memref<16x40xbf16, #tpu.memory_space<vmem>>, %arg3: memref<128x32xbf16, #tpu.memory_space<vmem>>, %arg4: memref<128x8xf32, #tpu.memory_space<vmem>>) attributes {dimension_semantics = [#tpu.dimension_semantics<parallel>], iteration_bounds = array<i64: 1>, scalar_prefetch = 0 : i64, scratch_operands = 0 : i64, tpu.core_type = #tpu.core_type<tc>, window_params = [{transform_indices = @transform_0, window_bounds = array<i64: 128, 16>}, {pipeline_mode = #tpu.pipeline_mode<synchronous>, transform_indices = @transform_1, window_bounds = array<i64: 16, 40>}, {transform_indices = @transform_2, window_bounds = array<i64: 128, 32>}, {transform_indices = @transform_3, window_bounds = array<i64: 128, 8>}]} {
    %c0 = arith.constant 0 : index
    %c0_0 = arith.constant 0 : index
    %0 = vector.load %arg1[%c0, %c0_0] : memref<128x16xf32, #tpu.memory_space<vmem>>, vector<128x16xf32>
    %1 = arith.truncf %0 : vector<128x16xf32> to vector<128x16xbf16>
    %c0_1 = arith.constant 0 : index
    %c0_2 = arith.constant 0 : index
    %2 = vector.load %arg2[%c0_1, %c0_2] : memref<16x40xbf16, #tpu.memory_space<vmem>>, vector<16x40xbf16>
    %cst = arith.constant dense<0.000000e+00> : vector<128x40xf32>
    %3 = tpu.matmul %1, %2, %cst {dimension_numbers = #tpu.dot_dimension_numbers<[1], [0], [0], [1], [0, 0, 1, 1], [], []>} : vector<128x16xbf16>, vector<16x40xbf16>, vector<128x40xf32> -> vector<128x40xf32>
    %4 = vector.extract_strided_slice %3 {offsets = [0, 0], sizes = [128, 32], strides = [1, 1]} : vector<128x40xf32> to vector<128x32xf32>
    %5 = arith.truncf %4 : vector<128x32xf32> to vector<128x32xbf16>
    %c0_3 = arith.constant 0 : index
    %c0_4 = arith.constant 0 : index
    %6 = vector.load %arg3[%c0_3, %c0_4] : memref<128x32xbf16, #tpu.memory_space<vmem>>, vector<128x32xbf16>
    tpu.vector_store %arg3[%c0_3, %c0_4], %5 {strides = array<i32>} : memref<128x32xbf16, #tpu.memory_space<vmem>>, vector<128x32xbf16>,
    %7 = vector.extract_strided_slice %3 {offsets = [0, 32], sizes = [128, 8], strides = [1, 1]} : vector<128x40xf32> to vector<128x8xf32>
    %c0_5 = arith.constant 0 : index
    %c0_6 = arith.constant 0 : index
    %8 = vector.load %arg4[%c0_5, %c0_6] : memref<128x8xf32, #tpu.memory_space<vmem>>, vector<128x8xf32>
    tpu.vector_store %arg4[%c0_5, %c0_6], %7 {strides = array<i32>} : memref<128x8xf32, #tpu.memory_space<vmem>>, vector<128x8xf32>,
    return
  }
  func.func @transform_0(%arg0: i32) -> (i32, i32) {
    %c0_i32 = arith.constant 0 : i32
    %c0_i32_0 = arith.constant 0 : i32
    return %arg0, %c0_i32 : i32, i32
  }
  func.func @transform_1(%arg0: i32) -> (i32, i32) {
    %c0_i32 = arith.constant 0 : i32
    %c0_i32_0 = arith.constant 0 : i32
    %c0_i32_1 = arith.constant 0 : i32
    return %c0_i32, %c0_i32_0 : i32, i32
  }
  func.func @transform_2(%arg0: i32) -> (i32, i32) {
    %c0_i32 = arith.constant 0 : i32
    %c0_i32_0 = arith.constant 0 : i32
    return %arg0, %c0_i32 : i32, i32
  }
  func.func @transform_3(%arg0: i32) -> (i32, i32) {
    %c0_i32 = arith.constant 0 : i32
    %c0_i32_0 = arith.constant 0 : i32
    return %arg0, %c0_i32 : i32, i32
  }
}

</mosaic_0001>

<llo_original>
// kernel: tpu_custom_call.1
$region0: #{tpu_custom_call.1}
  #allocation0 [shape = 'u32[]', space=smem, size = 0x4, offset = 0x4, fixed_abs, tag = 'smem constant byte address 0x4 - core index']
  #allocation1 [shape = 'u32[72,128]{1,0:T(1,128)}', space=vmem, size = 0x9000, scoped, tag = 'internal scratch']
  %s0 = inlined_call_operand.vmem [shape: f32[128,16], index: 0, kind: input, shape index: {}]
  %s1 = inlined_call_operand.vmem [shape: bf16[16,40], index: 1, kind: input, shape index: {}]
  %s2 = inlined_call_operand.vmem [shape: bf16[128,32], index: 2, kind: output, shape index: {0}]
  %s3 = inlined_call_operand.vmem [shape: f32[128,8], index: 3, kind: output, shape index: {1}]
  %4 = xla_tuple %s2, %s3
  %s5 = sld [smem:[#allocation0]]
  $region26: #{tpu_custom_call.1} parent=0
    _
  %s7 = ssub.s32 1, %s5
  %s8 = scalar_select 0, %s7, %s5
  // Predicated region
  $region2: #{tpu_custom_call.1} parent=0 // pred_check
    _
  $region3: #{tpu_custom_call.1} parent=0 // pred_check_branch
    %10 = sbr.rel (0) target = $region5
  $region4: #{tpu_custom_call.1} parent=0 // pred_region
    _
  $region5: #{tpu_custom_call.1} parent=0 // pred_fallthru
    _
  // Predicated region
  $region6: #{tpu_custom_call.1} parent=0 // pred_check
    _
  $region7: #{tpu_custom_call.1} parent=0 // pred_check_branch
    %12 = sbr.rel (0) target = $region9
  $region8: #{tpu_custom_call.1} parent=0 // pred_region
    _
  $region9: #{tpu_custom_call.1} parent=0 // pred_fallthru
    _
  %v14 = vld [vmem:[%s0] sm:$0xff]
  %v15 = vld [vmem:[%s0 + $0x8] sm:$0xff]
  %v16 = vld [vmem:[%s0 + $0x10] sm:$0xff]
  %v17 = vld [vmem:[%s0 + $0x18] sm:$0xff]
  %v18 = vld [vmem:[%s0 + $0x20] sm:$0xff]
  %v19 = vld [vmem:[%s0 + $0x28] sm:$0xff]
  %v20 = vld [vmem:[%s0 + $0x30] sm:$0xff]
  %v21 = vld [vmem:[%s0 + $0x38] sm:$0xff]
  %v22 = vld [vmem:[%s0 + $0x40] sm:$0xff]
  %v23 = vld [vmem:[%s0 + $0x48] sm:$0xff]
  %v24 = vld [vmem:[%s0 + $0x50] sm:$0xff]
  %v25 = vld [vmem:[%s0 + $0x58] sm:$0xff]
  %v26 = vld [vmem:[%s0 + $0x60] sm:$0xff]
  %v27 = vld [vmem:[%s0 + $0x68] sm:$0xff]
  %v28 = vld [vmem:[%s0 + $0x70] sm:$0xff]
  %v29 = vld [vmem:[%s0 + $0x78] sm:$0xff]
  %v30 = vpack.c.bf16 %v15, %v14
  %v31 = vpack.c.bf16 %v17, %v16
  %v32 = vpack.c.bf16 %v19, %v18
  %v33 = vpack.c.bf16 %v21, %v20
  %v34 = vpack.c.bf16 %v23, %v22
  %v35 = vpack.c.bf16 %v25, %v24
  %v36 = vpack.c.bf16 %v27, %v26
  %v37 = vpack.c.bf16 %v29, %v28
  %v38 = vld [vmem:[%s1] sm:$0xf]
  %v39 = vld [vmem:[%s1 + $0x4] sm:$0xf]
  %v42 = vunpack.c.l.b16 %v38
  %v43 = vunpack.c.l.b16 %v39
  %v44 = vpack.c.b16 %v43, %v42
  %vm46 = vcmask 130048
  %v48 = vsel %vm46, %v30, 0
  %v51 = vsel %vm46, %v31, 0
  %v54 = vsel %vm46, %v32, 0
  %v57 = vsel %vm46, %v33, 0
  %v60 = vsel %vm46, %v34, 0
  %v63 = vsel %vm46, %v35, 0
  %v66 = vsel %vm46, %v36, 0
  %v69 = vsel %vm46, %v37, 0
  %71 = vmatpush.bf16.msra.mxu0 0
  %72 = vmatpush.bf16.msra.mxu0 0
  %73 = vmatpush.bf16.msra.mxu0 0
  %74 = vmatpush.bf16.msra.mxu0 0
  %75 = vmatpush.bf16.msra.mxu0 0
  %76 = vmatpush.bf16.msra.mxu0 0
  %77 = vmatpush.bf16.msra.mxu0 0
  %78 = vmatpush.bf16.msra.mxu0 %v44
  %79 = vmatmul.bf16.gmra.mxu0 %v48
  %v80 = vpop.f32.mrf.mxu0
  %v81 = vadd.f32 0.0, %v80
  %v82 = vpop.f32.mrf.mxu0
  %v83 = vadd.f32 0.0, %v82
  %84 = vmatmul.bf16.gmra.mxu0 %v51
  %v85 = vpop.f32.mrf.mxu0
  %v86 = vadd.f32 0.0, %v85
  %v87 = vpop.f32.mrf.mxu0
  %v88 = vadd.f32 0.0, %v87
  %89 = vmatmul.bf16.gmra.mxu0 %v54
  %v90 = vpop.f32.mrf.mxu0
  %v91 = vadd.f32 0.0, %v90
  %v92 = vpop.f32.mrf.mxu0
  %v93 = vadd.f32 0.0, %v92
  %94 = vmatmul.bf16.gmra.mxu0 %v57
  %v95 = vpop.f32.mrf.mxu0
  %v96 = vadd.f32 0.0, %v95
  %v97 = vpop.f32.mrf.mxu0
  %v98 = vadd.f32 0.0, %v97
  %99 = vmatmul.bf16.gmra.mxu0 %v60
  %v100 = vpop.f32.mrf.mxu0
  %v101 = vadd.f32 0.0, %v100
  %v102 = vpop.f32.mrf.mxu0
  %v103 = vadd.f32 0.0, %v102
  %104 = vmatmul.bf16.gmra.mxu0 %v63
  %v105 = vpop.f32.mrf.mxu0
  %v106 = vadd.f32 0.0, %v105
  %v107 = vpop.f32.mrf.mxu0
  %v108 = vadd.f32 0.0, %v107
  %109 = vmatmul.bf16.gmra.mxu0 %v66
  %v110 = vpop.f32.mrf.mxu0
  %v111 = vadd.f32 0.0, %v110
  %v112 = vpop.f32.mrf.mxu0
  %v113 = vadd.f32 0.0, %v112
  %114 = vmatmul.bf16.gmra.mxu0 %v69
  %v115 = vpop.f32.mrf.mxu0
  %v116 = vadd.f32 0.0, %v115
  %v117 = vpop.f32.mrf.mxu0
  %v118 = vadd.f32 0.0, %v117
  %119 = vdwg.mxu0
  %v120 = vpack.c.bf16 %v81, %v81
  %v121 = vpack.c.bf16 %v83, %v83
  %v122 = vpack.c.bf16 %v86, %v86
  %v123 = vpack.c.bf16 %v88, %v88
  %v124 = vpack.c.bf16 %v91, %v91
  %v125 = vpack.c.bf16 %v93, %v93
  %v126 = vpack.c.bf16 %v96, %v96
  %v127 = vpack.c.bf16 %v98, %v98
  %v128 = vpack.c.bf16 %v101, %v101
  %v129 = vpack.c.bf16 %v103, %v103
  %v130 = vpack.c.bf16 %v106, %v106
  %v131 = vpack.c.bf16 %v108, %v108
  %v132 = vpack.c.bf16 %v111, %v111
  %v133 = vpack.c.bf16 %v113, %v113
  %v134 = vpack.c.bf16 %v116, %v116
  %v135 = vpack.c.bf16 %v118, %v118
  %vm136 = vcmask 257024
  %137 = vst.msk [vmem:[%s2] sm:$0xf] %vm136, %v120
  %138 = vst.msk [vmem:[%s2 + $0x4] sm:$0xf] %vm136, %v121
  %139 = vst.msk [vmem:[%s2 + $0x8] sm:$0xf] %vm136, %v122
  %140 = vst.msk [vmem:[%s2 + $0xc] sm:$0xf] %vm136, %v123
  %141 = vst.msk [vmem:[%s2 + $0x10] sm:$0xf] %vm136, %v124
  %142 = vst.msk [vmem:[%s2 + $0x14] sm:$0xf] %vm136, %v125
  %143 = vst.msk [vmem:[%s2 + $0x18] sm:$0xf] %vm136, %v126
  %144 = vst.msk [vmem:[%s2 + $0x1c] sm:$0xf] %vm136, %v127
  %145 = vst.msk [vmem:[%s2 + $0x20] sm:$0xf] %vm136, %v128
  %146 = vst.msk [vmem:[%s2 + $0x24] sm:$0xf] %vm136, %v129
  %147 = vst.msk [vmem:[%s2 + $0x28] sm:$0xf] %vm136, %v130
  %148 = vst.msk [vmem:[%s2 + $0x2c] sm:$0xf] %vm136, %v131
  %149 = vst.msk [vmem:[%s2 + $0x30] sm:$0xf] %vm136, %v132
  %150 = vst.msk [vmem:[%s2 + $0x34] sm:$0xf] %vm136, %v133
  %151 = vst.msk [vmem:[%s2 + $0x38] sm:$0xf] %vm136, %v134
  %152 = vst.msk [vmem:[%s2 + $0x3c] sm:$0xf] %vm136, %v135
  %169 = vrot.lane.b32.xlu0 %v81, 96
  %v170 = vpop.permute.xlu0 %169
  %171 = vrot.lane.b32.xlu0 %v83, 96
  %v172 = vpop.permute.xlu0 %171
  %173 = vrot.lane.b32.xlu0 %v86, 96
  %v174 = vpop.permute.xlu0 %173
  %175 = vrot.lane.b32.xlu0 %v88, 96
  %v176 = vpop.permute.xlu0 %175
  %177 = vrot.lane.b32.xlu0 %v91, 96
  %v178 = vpop.permute.xlu0 %177
  %179 = vrot.lane.b32.xlu0 %v93, 96
  %v180 = vpop.permute.xlu0 %179
  %181 = vrot.lane.b32.xlu0 %v96, 96
  %v182 = vpop.permute.xlu0 %181
  %183 = vrot.lane.b32.xlu0 %v98, 96
  %v184 = vpop.permute.xlu0 %183
  %185 = vrot.lane.b32.xlu0 %v101, 96
  %v186 = vpop.permute.xlu0 %185
  %187 = vrot.lane.b32.xlu0 %v103, 96
  %v188 = vpop.permute.xlu0 %187
  %189 = vrot.lane.b32.xlu0 %v106, 96
  %v190 = vpop.permute.xlu0 %189
  %191 = vrot.lane.b32.xlu0 %v108, 96
  %v192 = vpop.permute.xlu0 %191
  %193 = vrot.lane.b32.xlu0 %v111, 96
  %v194 = vpop.permute.xlu0 %193
  %195 = vrot.lane.b32.xlu0 %v113, 96
  %v196 = vpop.permute.xlu0 %195
  %197 = vrot.lane.b32.xlu0 %v116, 96
  %v198 = vpop.permute.xlu0 %197
  %199 = vrot.lane.b32.xlu0 %v118, 96
  %v200 = vpop.permute.xlu0 %199
  %vm217 = vcmask 64512
  %218 = vst.msk [vmem:[%s3] sm:$0xff] %vm217, %v170
  %219 = vst.msk [vmem:[%s3 + $0x8] sm:$0xff] %vm217, %v172
  %220 = vst.msk [vmem:[%s3 + $0x10] sm:$0xff] %vm217, %v174
  %221 = vst.msk [vmem:[%s3 + $0x18] sm:$0xff] %vm217, %v176
  %222 = vst.msk [vmem:[%s3 + $0x20] sm:$0xff] %vm217, %v178
  %223 = vst.msk [vmem:[%s3 + $0x28] sm:$0xff] %vm217, %v180
  %224 = vst.msk [vmem:[%s3 + $0x30] sm:$0xff] %vm217, %v182
  %225 = vst.msk [vmem:[%s3 + $0x38] sm:$0xff] %vm217, %v184
  %226 = vst.msk [vmem:[%s3 + $0x40] sm:$0xff] %vm217, %v186
  %227 = vst.msk [vmem:[%s3 + $0x48] sm:$0xff] %vm217, %v188
  %228 = vst.msk [vmem:[%s3 + $0x50] sm:$0xff] %vm217, %v190
  %229 = vst.msk [vmem:[%s3 + $0x58] sm:$0xff] %vm217, %v192
  %230 = vst.msk [vmem:[%s3 + $0x60] sm:$0xff] %vm217, %v194
  %231 = vst.msk [vmem:[%s3 + $0x68] sm:$0xff] %vm217, %v196
  %232 = vst.msk [vmem:[%s3 + $0x70] sm:$0xff] %vm217, %v198
  %233 = vst.msk [vmem:[%s3 + $0x78] sm:$0xff] %vm217, %v200
  // Predicated region
  $region10: #{tpu_custom_call.1} parent=0 // pred_check
    _
  $region11: #{tpu_custom_call.1} parent=0 // pred_check_branch
    %235 = sbr.rel (0) target = $region13
  $region12: #{tpu_custom_call.1} parent=0 // pred_region
    _
  $region13: #{tpu_custom_call.1} parent=0 // pred_fallthru
    _
  // Predicated region
  $region14: #{tpu_custom_call.1} parent=0 // pred_check
    _
  $region15: #{tpu_custom_call.1} parent=0 // pred_check_branch
    %237 = sbr.rel (0) target = $region17
  $region16: #{tpu_custom_call.1} parent=0 // pred_region
    _
  $region17: #{tpu_custom_call.1} parent=0 // pred_fallthru
    _
  // Predicated region
  $region18: #{tpu_custom_call.1} parent=0 // pred_check
    _
  $region19: #{tpu_custom_call.1} parent=0 // pred_check_branch
    %239 = sbr.rel (0) target = $region21
  $region20: #{tpu_custom_call.1} parent=0 // pred_region
    _
  $region21: #{tpu_custom_call.1} parent=0 // pred_fallthru
    _
  // Predicated region
  $region22: #{tpu_custom_call.1} parent=0 // pred_check
    _
  $region23: #{tpu_custom_call.1} parent=0 // pred_check_branch
    %241 = sbr.rel (0) target = $region25
  $region24: #{tpu_custom_call.1} parent=0 // pred_region
    _
  $region25: #{tpu_custom_call.1} parent=0 // pred_fallthru
    _

</llo_original>
